<compile_context>
chip_gen: v7x
topology: tpu7x:2x2x1
jax: 0.10.0
libtpu: 0.0.40
codegen_flags: <defaults>
</compile_context>

<pallas_src>
import jax
import jax.numpy as jnp
from jax import lax
from jax.experimental import pallas as pl
from jax.experimental.pallas import tpu as pltpu


_V_CHUNK = 2048        # max lane width of the one-hot select temporaries
_ROW_SUB = 256         # row sub-block for compute temporaries (stream path)
_SLAB = 128            # lane width of one gathered slab (gather path)
_NBUF = 8              # in-flight per-row slab DMAs (gather path)
_GATHER_MIN_V = 4096   # below this, streaming the whole row is cheaper


def _vmem_capacity_bytes():
    try:
        info = pltpu.get_tpu_info()
        cap = getattr(info, "vmem_capacity_bytes", None)
        if cap:
            return int(cap)
    except Exception:
        pass
    return 128 * 1024 * 1024


# --------------------------------------------------------------------------
# Streaming path (small vocab): read all V columns, one-hot select.
# --------------------------------------------------------------------------
def _choose_block_rows(n_rows, vocab, itemsize, vmem_cap):
    per_row = max(1, vocab * itemsize)
    temps = 3 * _ROW_SUB * min(vocab, _V_CHUNK) * 4
    budget = int(vmem_cap * 0.55)
    tile_target = min(8 << 20, max(1 << 20, (budget - temps) // 2))
    bk = max(8, tile_target // per_row)
    # Keep >= ~4 grid steps so the pipeline has something to overlap and the
    # "parallel" axis can shard across v7x's two TensorCores.
    bk = min(bk, max(8, -(-n_rows // 4)))
    if bk >= _ROW_SUB:
        bk = (bk // _ROW_SUB) * _ROW_SUB
    else:
        bk = max(8, (bk // 8) * 8)
    return int(bk)


def _vmem_limit_bytes(bk, vocab, itemsize, vmem_cap):
    tile = bk * vocab * itemsize                       # one input block
    temps = 3 * min(bk, _ROW_SUB) * min(vocab, _V_CHUNK) * 4
    small = 4 * bk * 4 + 4 * 8 * 128 * 4               # tgt/msk blocks + out
    need = 2 * tile + temps + small + (4 << 20)        # double-buffered input
    need = max(32 << 20, need)
    return int(min(need, int(vmem_cap * 0.9)))


def _make_stream_kernel(n_rows, block_rows, vocab):
    rs = min(_ROW_SUB, block_rows)
    assert block_rows % rs == 0
    n_sub = block_rows // rs
    v_cap = min(vocab, _V_CHUNK)

    def kernel(inp_ref, tgt_ref, msk_ref, out_ref):
        base = pl.program_id(0) * block_rows

        # Hoisted iotas (JAX does not CSE broadcast_in_dim).
        col_iota = lax.broadcasted_iota(jnp.int32, (rs, v_cap), 1)
        row_iota = lax.broadcasted_iota(jnp.int32, (rs, 1), 0)

        def sub_body(s, carry):
            num, den = carry
            r0 = pl.multiple_of(s * rs, rs)
            tgt = tgt_ref[pl.ds(r0, rs), :]                         # (rs,1) i32
            msk = msk_ref[pl.ds(r0, rs), :].astype(jnp.float32)     # (rs,1) f32
            valid = (base + r0 + row_iota) < n_rows                 # (rs,1)

            picked = jnp.zeros((rs, 1), jnp.float32)
            c0 = 0
            while c0 < vocab:
                w = min(_V_CHUNK, vocab - c0)
                # Select in the input dtype (exact: one survivor per row).
                chunk = inp_ref[pl.ds(r0, rs), c0:c0 + w]
                cols = col_iota if w == v_cap else col_iota[:, :w]
                hit = cols == (tgt - c0)
                sel = jnp.where(hit, chunk, jnp.zeros_like(chunk))
                picked = picked + jnp.sum(
                    sel, axis=1, keepdims=True).astype(jnp.float32)
                c0 += w

            # where-based masking: garbage (NaN/Inf) tail rows contribute 0.
            num = num + jnp.sum(jnp.where(valid, -picked * msk, 0.0))
            den = den + jnp.sum(jnp.where(valid, msk, 0.0))
            return num, den

        num, den = lax.fori_loop(
            0, n_sub, sub_body, (jnp.float32(0.0), jnp.float32(0.0)),
            unroll=(n_sub <= 2))

        r8 = lax.broadcasted_iota(jnp.int32, (8, 128), 0)
        c128 = lax.broadcasted_iota(jnp.int32, (8, 128), 1)
        out_ref[0] = jnp.where((r8 == 0) & (c128 == 0), num,
                               jnp.where((r8 == 0) & (c128 == 1), den, 0.0))

    return kernel


# --------------------------------------------------------------------------
# Gather path (large vocab): per-row DMA of the 128-lane slab holding target.
# --------------------------------------------------------------------------
def _choose_block_rows_gather(n_rows):
    bk = max(8, min(2048, -(-n_rows // 2)))   # >= 2 grid steps when possible
    return int(max(8, (bk // 8) * 8))


def _make_gather_kernel(n_rows, block_rows, vocab):
    nb = min(_NBUF, block_rows)

    def kernel(tgt_smem, msk_smem, inp_hbm, out_ref, buf, sem):
        row0 = pl.program_id(0) * block_rows

        def start(r):
            g = jnp.minimum(row0 + r, n_rows - 1)          # clamp: no OOB DMA
            t = tgt_smem[g]
            slab = jnp.clip((t // _SLAB) * _SLAB, 0, vocab - _SLAB)
            slot = r % _NBUF
            pltpu.make_async_copy(
                inp_hbm.at[pl.ds(g, 1), pl.ds(slab, _SLAB)],
                buf.at[slot],
                sem.at[slot]).start()

        lane = lax.broadcasted_iota(jnp.int32, (1, _SLAB), 1)

        def body(r, carry):
            num, den = carry
            slot = r % _NBUF
            pltpu.make_async_copy(
                inp_hbm.at[pl.ds(0, 1), pl.ds(0, _SLAB)],
                buf.at[slot], sem.at[slot]).wait()

            @pl.when(r + _NBUF < block_rows)
            def _():
                start(r + _NBUF)

            g = row0 + r
            gc = jnp.minimum(g, n_rows - 1)
            t = tgt_smem[gc]
            m = jnp.where(g < n_rows, msk_smem[gc], 0.0)
            slab = jnp.clip((t // _SLAB) * _SLAB, 0, vocab - _SLAB)
            vals = buf[slot]                               # (1, _SLAB)
            hit = (lane + slab) == t                       # OOR target: no hit
            p = jnp.sum(jnp.where(hit, vals, jnp.zeros_like(vals))
                        ).astype(jnp.float32)
            return num - p * m, den + m

        for r in range(nb):                                 # prime the pipe
            start(r)
        num, den = lax.fori_loop(
            0, block_rows, body, (jnp.float32(0.0), jnp.float32(0.0)))

        r8 = lax.broadcasted_iota(jnp.int32, (8, 128), 0)
        c128 = lax.broadcasted_iota(jnp.int32, (8, 128), 1)
        out_ref[0] = jnp.where((r8 == 0) & (c128 == 0), num,
                               jnp.where((r8 == 0) & (c128 == 1), den, 0.0))

    return kernel


# --------------------------------------------------------------------------
# Wrapper
# --------------------------------------------------------------------------
def language_model_criterion(inp, target, mask, *, block_rows=None):
    """inp: (B, T, V) float log-probs (f32 or bf16); target: (B, T_full) int;
    mask: (B, T_full) float.  Returns sum(-inp[r, tgt[r]]*mask[r]) / sum(mask)."""
    B, T, V = inp.shape
    target = target[:, :T]
    mask = mask[:, :T]

    inp2 = inp.reshape(-1, V)                          # (N, V), dtype preserved
    tgt1 = target.reshape(-1).astype(jnp.int32)        # (N,)
    msk1 = mask.reshape(-1).astype(jnp.float32)        # (N,)
    N = inp2.shape[0]
    itemsize = jnp.dtype(inp2.dtype).itemsize
    vmem_cap = _vmem_capacity_bytes()

    use_gather = (block_rows is None and V >= _GATHER_MIN_V and V % _SLAB == 0)

    if use_gather:
        bk = _choose_block_rows_gather(N)
        G = pl.cdiv(N, bk)
        partials = pl.pallas_call(
            _make_gather_kernel(N, bk, V),
            out_shape=jax.ShapeDtypeStruct((G, 8, 128), jnp.float32),
            grid_spec=pltpu.PrefetchScalarGridSpec(
                num_scalar_prefetch=2,
                grid=(G,),
                in_specs=[pl.BlockSpec(memory_space=pl.ANY)],
                out_specs=pl.BlockSpec((1, 8, 128), lambda i, *_: (i, 0, 0)),
                scratch_shapes=[
                    pltpu.VMEM((_NBUF, 1, _SLAB), inp2.dtype),
                    pltpu.SemaphoreType.DMA((_NBUF,)),
                ]),
            compiler_params=pltpu.CompilerParams(
                dimension_semantics=("parallel",)),
        )(tgt1, msk1, inp2)
    else:
        if block_rows is None:
            bk = _choose_block_rows(N, V, itemsize, vmem_cap)
        else:
            bk = int(block_rows)
            if bk >= _ROW_SUB:
                bk = (bk // _ROW_SUB) * _ROW_SUB
            else:
                bk = max(8, (bk // 8) * 8)
        G = pl.cdiv(N, bk)
        partials = pl.pallas_call(
            _make_stream_kernel(N, bk, V),
            out_shape=jax.ShapeDtypeStruct((G, 8, 128), jnp.float32),
            grid_spec=pltpu.PrefetchScalarGridSpec(
                num_scalar_prefetch=0,
                grid=(G,),
                in_specs=[
                    pl.BlockSpec((bk, V), lambda i: (i, 0)),
                    pl.BlockSpec((bk, 1), lambda i: (i, 0)),
                    pl.BlockSpec((bk, 1), lambda i: (i, 0)),
                ],
                out_specs=pl.BlockSpec((1, 8, 128), lambda i: (i, 0, 0)),
            ),
            compiler_params=pltpu.CompilerParams(
                dimension_semantics=("parallel",),
                vmem_limit_bytes=_vmem_limit_bytes(bk, V, itemsize, vmem_cap)),
        )(inp2, tgt1.reshape(-1, 1), msk1.reshape(-1, 1))

    num = jnp.sum(partials[:, 0, 0])
    den = jnp.sum(partials[:, 0, 1])
    return num / den


if __name__ == "__main__":
    def reference(logprobs, target, mask):
        b, t, v = logprobs.shape
        tt = target[:, :t].reshape(-1)
        mm = mask[:, :t].reshape(-1).astype(jnp.float32)
        lp = logprobs.reshape(-1, v).astype(jnp.float32)
        picked = lp[jnp.arange(lp.shape[0]), tt]
        return jnp.sum(-picked * mm) / jnp.sum(mm)

    key = jax.random.PRNGKey(0)

    # --- Streaming path, f32, with a ragged tail block (N = 18). ---
    B, T, T_full, V = 2, 9, 12, 128
    k1, k2, k3 = jax.random.split(key, 3)
    logits = jax.random.normal(k1, (B, T, V), dtype=jnp.float32)
    logprobs = jax.nn.log_softmax(logits, axis=-1)
    target = jax.random.randint(k2, (B, T_full), 0, V, dtype=jnp.int32)
    mask = (jax.random.uniform(k3, (B, T_full)) > 0.3).astype(jnp.float32)
    mask = mask.at[0, 0].set(1.0)   # ensure nonzero denominator

    out = language_model_criterion(logprobs, target, mask)
    jax.block_until_ready(out)
    ref = reference(logprobs, target, mask)
    assert jnp.allclose(out, ref, rtol=1e-5, atol=1e-5), (out, ref)

    # --- Streaming path, bf16 input (half the HBM bytes; f32 accumulation). ---
    out_bf16 = language_model_criterion(
        logprobs.astype(jnp.bfloat16), target, mask)
    jax.block_until_ready(out_bf16)
    ref_bf16 = reference(logprobs.astype(jnp.bfloat16), target, mask)
    assert jnp.allclose(out_bf16, ref_bf16, rtol=1e-2, atol=1e-2), (out_bf16, ref_bf16)

    # --- Target-indexed gather path (large vocab). ---
    Vg = 8192
    k4, k5, k6 = jax.random.split(jax.random.PRNGKey(1), 3)
    logits_g = jax.random.normal(k4, (B, T, Vg), dtype=jnp.float32)
    logprobs_g = jax.nn.log_softmax(logits_g, axis=-1)
    target_g = jax.random.randint(k5, (B, T_full), 0, Vg, dtype=jnp.int32)
    mask_g = (jax.random.uniform(k6, (B, T_full)) > 0.3).astype(jnp.float32)
    mask_g = mask_g.at[0, 0].set(1.0)

    out_g = language_model_criterion(logprobs_g, target_g, mask_g)
    jax.block_until_ready(out_g)
    ref_g = reference(logprobs_g, target_g, mask_g)
    assert jnp.allclose(out_g, ref_g, rtol=1e-5, atol=1e-5), (out_g, ref_g)

    print("KERNEL_OK")
</pallas_src>

<mosaic_0001>
module attributes {stable_mosaic.version = 11 : i64} {
  func.func @kernel(%arg0: i32, %arg1: memref<8x128xf32, #tpu.memory_space<vmem>>, %arg2: memref<8x1xi32, #tpu.memory_space<vmem>>, %arg3: memref<8x1xf32, #tpu.memory_space<vmem>>, %arg4: memref<1x8x128xf32, #tpu.memory_space<vmem>>) attributes {dimension_semantics = [#tpu.dimension_semantics<parallel>], iteration_bounds = array<i64: 3>, scalar_prefetch = 0 : i64, scratch_operands = 0 : i64, tpu.core_type = #tpu.core_type<tc>, window_params = [{transform_indices = @transform_0, window_bounds = array<i64: 8, 128>}, {transform_indices = @transform_1, window_bounds = array<i64: 8, 1>}, {transform_indices = @transform_2, window_bounds = array<i64: 8, 1>}, {transform_indices = @transform_3, window_bounds = array<i64: 1, 8, 128>}]} {
    %c8_i32 = arith.constant 8 : i32
    %0 = arith.muli %arg0, %c8_i32 : i32
    %1 = tpu.iota {dimensions = array<i32: 1>} : vector<8x128xi32>
    %2 = tpu.iota {dimensions = array<i32: 0>} : vector<8x1xi32>
    %cst = arith.constant 0.000000e+00 : f32
    %cst_0 = arith.constant 0.000000e+00 : f32
    %c0_i32 = arith.constant 0 : i32
    %c8_i32_1 = arith.constant 8 : i32
    %3 = arith.muli %c0_i32, %c8_i32_1 : i32
    %4 = tpu.assume_multiple %3, 8 : i32
    %5 = arith.index_cast %4 : i32 to index
    %c0 = arith.constant 0 : index
    %6 = vector.load %arg2[%5, %c0] : memref<8x1xi32, #tpu.memory_space<vmem>>, vector<8x1xi32>
    %7 = arith.index_cast %4 : i32 to index
    %c0_2 = arith.constant 0 : index
    %8 = vector.load %arg3[%7, %c0_2] : memref<8x1xf32, #tpu.memory_space<vmem>>, vector<8x1xf32>
    %9 = arith.addi %0, %4 : i32
    %10 = vector.broadcast %9 : i32 to vector<8x1xi32>
    %11 = arith.addi %10, %2 : vector<8x1xi32>
    %c18_i32 = arith.constant 18 : i32
    %12 = vector.broadcast %c18_i32 : i32 to vector<8x1xi32>
    %13 = arith.cmpi slt, %11, %12 : vector<8x1xi32>
    %cst_3 = arith.constant 0.000000e+00 : f32
    %14 = vector.broadcast %cst_3 : f32 to vector<8x1xf32>
    %15 = arith.index_cast %4 : i32 to index
    %c0_4 = arith.constant 0 : index
    %16 = vector.load %arg1[%15, %c0_4] : memref<8x128xf32, #tpu.memory_space<vmem>>, vector<8x128xf32>
    %c0_i32_5 = arith.constant 0 : i32
    %17 = vector.broadcast %c0_i32_5 : i32 to vector<8x1xi32>
    %18 = arith.subi %6, %17 : vector<8x1xi32>
    %19 = vector.broadcast %18 : vector<8x1xi32> to vector<8x128xi32>
    %20 = arith.cmpi eq, %1, %19 : vector<8x128xi32>
    %cst_6 = arith.constant 0.000000e+00 : f32
    %21 = vector.broadcast %cst_6 : f32 to vector<8x128xf32>
    %22 = arith.select %20, %16, %21 : vector<8x128xi1>, vector<8x128xf32>
    %cst_7 = arith.constant dense<0.000000e+00> : vector<8xf32>
    %23 = vector.multi_reduction <add>, %22, %cst_7 [1] : vector<8x128xf32> to vector<8xf32>
    %24 = vector.shape_cast %23 : vector<8xf32> to vector<8x1xf32>
    %25 = arith.addf %14, %24 : vector<8x1xf32>
    %cst_8 = arith.constant 0.000000e+00 : f32
    %26 = vector.broadcast %cst_8 : f32 to vector<8x1xf32>
    %27 = arith.subf %26, %25 : vector<8x1xf32>
    %28 = arith.mulf %27, %8 : vector<8x1xf32>
    %cst_9 = arith.constant 0.000000e+00 : f32
    %29 = vector.broadcast %cst_9 : f32 to vector<8x1xf32>
    %30 = arith.select %13, %28, %29 : vector<8x1xi1>, vector<8x1xf32>
    %31 = vector.shape_cast %30 : vector<8x1xf32> to vector<1x8x1xf32>
    %cst_10 = arith.constant dense<0.000000e+00> : vector<1xf32>
    %32 = vector.multi_reduction <add>, %31, %cst_10 [1, 2] : vector<1x8x1xf32> to vector<1xf32>
    %33 = vector.shape_cast %32 : vector<1xf32> to vector<1x1x1xf32>
    %34 = vector.extract %33[0, 0, 0] : f32 from vector<1x1x1xf32>
    %35 = arith.addf %cst, %34 : f32
    %cst_11 = arith.constant 0.000000e+00 : f32
    %36 = vector.broadcast %cst_11 : f32 to vector<8x1xf32>
    %37 = arith.select %13, %8, %36 : vector<8x1xi1>, vector<8x1xf32>
    %38 = vector.shape_cast %37 : vector<8x1xf32> to vector<1x8x1xf32>
    %cst_12 = arith.constant dense<0.000000e+00> : vector<1xf32>
    %39 = vector.multi_reduction <add>, %38, %cst_12 [1, 2] : vector<1x8x1xf32> to vector<1xf32>
    %40 = vector.shape_cast %39 : vector<1xf32> to vector<1x1x1xf32>
    %41 = vector.extract %40[0, 0, 0] : f32 from vector<1x1x1xf32>
    %42 = arith.addf %cst_0, %41 : f32
    %c1_i32 = arith.constant 1 : i32
    %43 = tpu.iota {dimensions = array<i32: 0>} : vector<8x128xi32>
    %44 = tpu.iota {dimensions = array<i32: 1>} : vector<8x128xi32>
    %c0_i32_13 = arith.constant 0 : i32
    %45 = vector.broadcast %c0_i32_13 : i32 to vector<8x128xi32>
    %46 = arith.cmpi eq, %43, %45 : vector<8x128xi32>
    %c0_i32_14 = arith.constant 0 : i32
    %47 = vector.broadcast %c0_i32_14 : i32 to vector<8x128xi32>
    %48 = arith.cmpi eq, %44, %47 : vector<8x128xi32>
    %49 = arith.andi %46, %48 : vector<8x128xi1>
    %c0_i32_15 = arith.constant 0 : i32
    %50 = vector.broadcast %c0_i32_15 : i32 to vector<8x128xi32>
    %51 = arith.cmpi eq, %43, %50 : vector<8x128xi32>
    %c1_i32_16 = arith.constant 1 : i32
    %52 = vector.broadcast %c1_i32_16 : i32 to vector<8x128xi32>
    %53 = arith.cmpi eq, %44, %52 : vector<8x128xi32>
    %54 = arith.andi %51, %53 : vector<8x128xi1>
    %cst_17 = arith.constant 0.000000e+00 : f32
    %55 = vector.broadcast %42 : f32 to vector<8x128xf32>
    %56 = vector.broadcast %cst_17 : f32 to vector<8x128xf32>
    %57 = arith.select %54, %55, %56 : vector<8x128xi1>, vector<8x128xf32>
    %58 = vector.broadcast %35 : f32 to vector<8x128xf32>
    %59 = arith.select %49, %58, %57 : vector<8x128xi1>, vector<8x128xf32>
    %c0_18 = arith.constant 0 : index
    %c0_19 = arith.constant 0 : index
    %c0_20 = arith.constant 0 : index
    %60 = vector.load %arg4[%c0_18, %c0_19, %c0_20] : memref<1x8x128xf32, #tpu.memory_space<vmem>>, vector<1x8x128xf32>
    %61 = vector.shape_cast %60 : vector<1x8x128xf32> to vector<8x128xf32>
    %62 = vector.shape_cast %59 : vector<8x128xf32> to vector<1x8x128xf32>
    tpu.vector_store %arg4[%c0_18, %c0_19, %c0_20], %62 {strides = array<i32>} : memref<1x8x128xf32, #tpu.memory_space<vmem>>, vector<1x8x128xf32>,
    return
  }
  func.func @transform_0(%arg0: i32) -> (i32, i32) {
    %c0_i32 = arith.constant 0 : i32
    %c0_i32_0 = arith.constant 0 : i32
    return %arg0, %c0_i32 : i32, i32
  }
  func.func @transform_1(%arg0: i32) -> (i32, i32) {
    %c0_i32 = arith.constant 0 : i32
    %c0_i32_0 = arith.constant 0 : i32
    return %arg0, %c0_i32 : i32, i32
  }
  func.func @transform_2(%arg0: i32) -> (i32, i32) {
    %c0_i32 = arith.constant 0 : i32
    %c0_i32_0 = arith.constant 0 : i32
    return %arg0, %c0_i32 : i32, i32
  }
  func.func @transform_3(%arg0: i32) -> (i32, i32, i32) {
    %c0_i32 = arith.constant 0 : i32
    %c0_i32_0 = arith.constant 0 : i32
    %c0_i32_1 = arith.constant 0 : i32
    return %arg0, %c0_i32, %c0_i32_0 : i32, i32, i32
  }
}

</mosaic_0001>

<llo_original>
// kernel: tpu_custom_call.1
$region0: #{tpu_custom_call.1}
  #allocation0 [shape = 'u32[]', space=smem, size = 0x4, offset = 0x4, fixed_abs, tag = 'smem constant byte address 0x4 - core index']
  #allocation1 [shape = 'u32[144,128]{1,0:T(1,128)}', space=vmem, size = 0x12000, scoped, tag = 'internal scratch']
  %s0 = inlined_call_operand.vmem [shape: f32[18,128], index: 0, kind: input, shape index: {}]
  %s1 = inlined_call_operand.vmem [shape: s32[18,1], index: 1, kind: input, shape index: {}]
  %s2 = inlined_call_operand.vmem [shape: f32[18,1], index: 2, kind: input, shape index: {}]
  %s3 = inlined_call_operand.hbm [shape: f32[3,8,128], index: 3, kind: output, shape index: {}]
  %s4 = sld [smem:[#allocation0]]
  $region45: #{tpu_custom_call.1} parent=0
    _
  %s6 = ssub.s32 1, %s4
  %s7 = scalar_select 0, %s6, %s4
  $region1: #{tpu_custom_call.1} parent=0
    #allocation2 [shape = 'u8[8192]{0}', space=vmem, size = 0x2000, scoped, tag = 'output window, operand 0']
    #allocation3 [shape = 's32[2]{0}', space=sflag, size = 0x8, scoped, tag = 'scoped memory for tpu_custom_call.1']
    %8 = vsyncpa [#allocation3], 0
    %s9 = scalar_lea.sflag [#allocation3], 1
    %10 = vsyncpa %s9, 0
    loop: start=0, step=1, limit=5
    $region2: #{tpu_custom_call.1} parent=1 // loop_pre_header
      _
    $region3: #{tpu_custom_call.1} parent=1 // loop_header
      %s12 = sphi 0, %s16
      %p13 = scmp.ge.s32.totalorder %s12, 5
      %s22 = sphi 0, %s24
      %s25 = sphi 0, %s22
      %s26 = sphi 0, %s25
      %s42 = sphi 0, %s26
      %s48 = sphi 0, %s50
      %s51 = sphi 0, %s48
      %s52 = sphi 0, %s51
      %s68 = sphi 0, %s52
      %s74 = sphi 0, %s76
      %s77 = sphi 0, %s74
      %s78 = sphi 0, %s77
      %s94 = sphi 0, %s78
      %s100 = sphi 0, %s102
      %s103 = sphi 0, %s100
      %s104 = sphi 0, %s103
      %s120 = sphi 0, %s104
    $region4: #{tpu_custom_call.1} parent=1 // loop_header_branch
      %15 = sbr.rel (%p13) target = $region8
    $region5: #{tpu_custom_call.1} parent=1 // loop_body
      %s17 = ssub.s32 %s12, 1
      %s18 = ssub.s32 %s12, 2
      %s19 = sadd.s32 %s12, 1
      %s20 = ssub.s32 %s12, %s19
      %p21 = scmp.eq.s32.totalorder %s20, 0
      %s23 = sadd.s32 %s22, 1
      %s24 = scalar_select %p21, %s22, %s23
      %p27 = pneg %p21
      %p28 = scmp.eq.s32.totalorder %s12, 2
      %p29 = por %p27, %p28
      %p30 = scmp.ne.s32.totalorder %s22, %s25
      %p31 = scmp.eq.s32.totalorder %s12, 0
      %p32 = por %p30, %p31
      %p33 = scmp.ne.s32.totalorder %s22, %s25
      %p34 = scmp.eq.s32.totalorder %s17, 2
      %p35 = por %p33, %p34
      %p36 = scmp.ne.s32.totalorder %s25, %s26
      %p37 = scmp.eq.s32.totalorder %s17, 0
      %p38 = por %p36, %p37
      %p39 = scmp.ne.s32.totalorder %s25, %s26
      %p40 = scmp.eq.s32.totalorder %s18, 2
      %p41 = por %p39, %p40
      %p43 = scmp.ne.s32.totalorder %s26, %s42
      %p44 = scmp.eq.s32.totalorder %s18, 0
      %p45 = por %p43, %p44
      %s46 = ssub.s32 %s12, %s19
      %p47 = scmp.eq.s32.totalorder %s46, 0
      %s49 = sadd.s32 %s48, 1
      %s50 = scalar_select %p47, %s48, %s49
      %p53 = pneg %p47
      %p54 = scmp.eq.s32.totalorder %s12, 2
      %p55 = por %p53, %p54
      %p56 = scmp.ne.s32.totalorder %s48, %s51
      %p57 = scmp.eq.s32.totalorder %s12, 0
      %p58 = por %p56, %p57
      %p59 = scmp.ne.s32.totalorder %s48, %s51
      %p60 = scmp.eq.s32.totalorder %s17, 2
      %p61 = por %p59, %p60
      %p62 = scmp.ne.s32.totalorder %s51, %s52
      %p63 = scmp.eq.s32.totalorder %s17, 0
      %p64 = por %p62, %p63
      %p65 = scmp.ne.s32.totalorder %s51, %s52
      %p66 = scmp.eq.s32.totalorder %s18, 2
      %p67 = por %p65, %p66
      %p69 = scmp.ne.s32.totalorder %s52, %s68
      %p70 = scmp.eq.s32.totalorder %s18, 0
      %p71 = por %p69, %p70
      %s72 = ssub.s32 %s12, %s19
      %p73 = scmp.eq.s32.totalorder %s72, 0
      %s75 = sadd.s32 %s74, 1
      %s76 = scalar_select %p73, %s74, %s75
      %p79 = pneg %p73
      %p80 = scmp.eq.s32.totalorder %s12, 2
      %p81 = por %p79, %p80
      %p82 = scmp.ne.s32.totalorder %s74, %s77
      %p83 = scmp.eq.s32.totalorder %s12, 0
      %p84 = por %p82, %p83
      %p85 = scmp.ne.s32.totalorder %s74, %s77
      %p86 = scmp.eq.s32.totalorder %s17, 2
      %p87 = por %p85, %p86
      %p88 = scmp.ne.s32.totalorder %s77, %s78
      %p89 = scmp.eq.s32.totalorder %s17, 0
      %p90 = por %p88, %p89
      %p91 = scmp.ne.s32.totalorder %s77, %s78
      %p92 = scmp.eq.s32.totalorder %s18, 2
      %p93 = por %p91, %p92
      %p95 = scmp.ne.s32.totalorder %s78, %s94
      %p96 = scmp.eq.s32.totalorder %s18, 0
      %p97 = por %p95, %p96
      %s98 = ssub.s32 %s12, %s19
      %p99 = scmp.eq.s32.totalorder %s98, 0
      %s101 = sadd.s32 %s100, 1
      %s102 = scalar_select %p99, %s100, %s101
      %p105 = pneg %p99
      %p106 = scmp.eq.s32.totalorder %s12, 2
      %p107 = por %p105, %p106
      %p108 = scmp.ne.s32.totalorder %s100, %s103
      %p109 = scmp.eq.s32.totalorder %s12, 0
      %p110 = por %p108, %p109
      %p111 = scmp.ne.s32.totalorder %s100, %s103
      %p112 = scmp.eq.s32.totalorder %s17, 2
      %p113 = por %p111, %p112
      %p114 = scmp.ne.s32.totalorder %s103, %s104
      %p115 = scmp.eq.s32.totalorder %s17, 0
      %p116 = por %p114, %p115
      %p117 = scmp.ne.s32.totalorder %s103, %s104
      %p118 = scmp.eq.s32.totalorder %s18, 2
      %p119 = por %p117, %p118
      %p121 = scmp.ne.s32.totalorder %s104, %s120
      %p122 = scmp.eq.s32.totalorder %s18, 0
      %p123 = por %p121, %p122
      %p124 = scmp.le.s32.totalorder 1, %s12
      %p125 = scmp.lt.s32.totalorder %s12, 4
      %p126 = pnand %p124, %p125
      %p127 = pneg %p126
      // Predicated region
      $region9: #{tpu_custom_call.1} parent=5 // pred_check
        _
      $region10: #{tpu_custom_call.1} parent=5 // pred_check_branch
        %129 = sbr.rel (%p126) target = $region12
      $region11: #{tpu_custom_call.1} parent=5 // pred_region
        %s130 = ssub.s32 %s12, 1
      $region12: #{tpu_custom_call.1} parent=5 // pred_fallthru
        _
      %p131 = scmp.lt.s32.totalorder %s12, 3
      // Predicated region
      $region13: #{tpu_custom_call.1} parent=5 // pred_check
        %p132 = pneg %p131
      $region14: #{tpu_custom_call.1} parent=5 // pred_check_branch
        %134 = sbr.rel (%p132) target = $region16
      $region15: #{tpu_custom_call.1} parent=5 // pred_region
        // Predicated region
        $region17: #{tpu_custom_call.1} parent=15 // pred_check
          %p135 = pneg %p32
        $region18: #{tpu_custom_call.1} parent=15 // pred_check_branch
          %137 = sbr.rel (%p135) target = $region20
        $region19: #{tpu_custom_call.1} parent=15 // pred_region
          %p138 = scmp.lt.s32.totalorder %s12, 2
          %s139 = scalar_select %p138, %s12, 2
          %s140 = smul.addr %s139, 8
          %s141 = scalar_lea.vmem %s0, %s140
        $region20: #{tpu_custom_call.1} parent=15 // pred_fallthru
          _
        // Predicated region
        $region21: #{tpu_custom_call.1} parent=15 // pred_check
          %p142 = pneg %p58
        $region22: #{tpu_custom_call.1} parent=15 // pred_check_branch
          %144 = sbr.rel (%p142) target = $region24
        $region23: #{tpu_custom_call.1} parent=15 // pred_region
          %p145 = scmp.lt.s32.totalorder %s12, 2
          %s146 = scalar_select %p145, %s12, 2
          %s147 = smul.addr %s146, 8
          %s148 = scalar_lea.vmem %s1, %s147
        $region24: #{tpu_custom_call.1} parent=15 // pred_fallthru
          _
        // Predicated region
        $region25: #{tpu_custom_call.1} parent=15 // pred_check
          %p149 = pneg %p84
        $region26: #{tpu_custom_call.1} parent=15 // pred_check_branch
          %151 = sbr.rel (%p149) target = $region28
        $region27: #{tpu_custom_call.1} parent=15 // pred_region
          %p152 = scmp.lt.s32.totalorder %s12, 2
          %s153 = scalar_select %p152, %s12, 2
          %s154 = smul.addr %s153, 8
          %s155 = scalar_lea.vmem %s2, %s154
        $region28: #{tpu_custom_call.1} parent=15 // pred_fallthru
          _
      $region16: #{tpu_custom_call.1} parent=5 // pred_fallthru
        _
      %p156 = scmp.le.s32.totalorder 1, %s12
      %p157 = scmp.lt.s32.totalorder %s12, 4
      %p158 = pnand %p156, %p157
      %p159 = pneg %p158
      // Predicated region
      $region29: #{tpu_custom_call.1} parent=5 // pred_check
        _
      $region30: #{tpu_custom_call.1} parent=5 // pred_check_branch
        %161 = sbr.rel (%p158) target = $region32
      $region31: #{tpu_custom_call.1} parent=5 // pred_region
        %s162 = ssub.s32 %s12, 1
        %p163 = scmp.lt.s32.totalorder %s17, 2
        %s164 = scalar_select %p163, %s17, 2
        %s165 = smul.addr %s164, 8
        %s166 = scalar_lea.vmem %s0, %s165
        %p167 = pneg %p38
        %p168 = pneg %p35
        %p169 = scmp.lt.s32.totalorder %s17, 2
        %s170 = scalar_select %p169, %s17, 2
        %s171 = smul.addr %s170, 8
        %s172 = scalar_lea.vmem %s1, %s171
        %p173 = pneg %p64
        %p174 = pneg %p61
        %p175 = scmp.lt.s32.totalorder %s17, 2
        %s176 = scalar_select %p175, %s17, 2
        %s177 = smul.addr %s176, 8
        %s178 = scalar_lea.vmem %s2, %s177
        %p179 = pneg %p90
        %p180 = pneg %p87
        %p181 = pneg %p116
        %p182 = pneg %p113
        %s183 = sand.u32 %s103, 1
        %s184 = scalar_lea.sflag [#allocation3], %s183
        %s185 = sand.u32 %s103, 1
        %s186 = smul.addr %s185, 8
        %s187 = scalar_lea.vmem [#allocation2], %s186
        %p188 = scmp.lt.s32.totalorder %s17, 2
        %s189 = scalar_select %p188, %s17, 2
        %s190 = smul.addr %s189, 8
        %s191 = scalar_lea.vmem %s0, %s190
        %p192 = scmp.lt.s32.totalorder %s17, 2
        %s193 = scalar_select %p192, %s17, 2
        %s194 = smul.addr %s193, 8
        %s195 = scalar_lea.vmem %s1, %s194
        %p196 = scmp.lt.s32.totalorder %s17, 2
        %s197 = scalar_select %p196, %s17, 2
        %s198 = smul.addr %s197, 8
        %s199 = scalar_lea.vmem %s2, %s198
        %s200 = smul.u32 %s17, 8
        %v201 = vlaneseq
        %v202 = vand.u32 %v201, 127
        %v203 = vlaneseq
        %v204 = vshrl.u32 %v203, 7
        %v205 = vld [vmem:[%s195] sm:$0xff]
        %v206 = vld [vmem:[%s199] sm:$0xff]
        %s207 = sadd.s32 %s200, 0
        %v208 = vstv %s207
        %v209 = vadd.s32 %v208, %v204
        %vm210 = vcmp.lt.s32.totalorder %v209, 18
        %v211 = vld [vmem:[%s191] sm:$0xff]
        %212 = vset.pattern.permute.xlu0 0
        %213 = vperm.xlu0 %212, %v205
        %v214 = vpop.permute.xlu0 %213
        %vm215 = vcmp.eq.s32.totalorder %v202, %v214
        %v216 = vsel %vm215, %v211, 0.0
        %217 = vadd.xlane.f32.xlu0 %v216
        %v218 = vpop.xlane.xlu0 %217
        %v219 = vadd.f32 %v218, 0.0
        %v220 = vsub.f32 0.0, %v219
        %v221 = vmul.f32 %v220, %v206
        %v222 = vsel %vm210, %v221, 0.0
        %vm223 = vcmask 7168
        %v224 = vsel %vm223, %v222, 0.0
        %225 = vadd.xlane.f32.xlu0 %v224
        %v226 = vpop.xlane.xlu0 %225
        %v227 = vrot.slane %v226, 4
        %v228 = vadd.f32 %v226, %v227
        %v229 = vrot.slane %v228, 2
        %v230 = vadd.f32 %v228, %v229
        %v231 = vrot.slane %v230, 1
        %v232 = vadd.f32 %v230, %v231
        %s233 = vtos %v232
        %s234 = sadd.f32 %s233, 0.0
        %v235 = vsel %vm210, %v206, 0.0
        %v236 = vsel %vm223, %v235, 0.0
        %237 = vadd.xlane.f32.xlu0 %v236
        %v238 = vpop.xlane.xlu0 %237
        %v239 = vrot.slane %v238, 4
        %v240 = vadd.f32 %v238, %v239
        %v241 = vrot.slane %v240, 2
        %v242 = vadd.f32 %v240, %v241
        %v243 = vrot.slane %v242, 1
        %v244 = vadd.f32 %v242, %v243
        %s245 = vtos %v244
        %s246 = sadd.f32 %s245, 0.0
        %vm247 = vcmp.eq.s32.totalorder %v204, 0
        %vm248 = vcmp.eq.s32.totalorder %v202, 0
        %vm249 = vmand %vm247, %vm248
        %vm250 = vcmp.eq.s32.totalorder %v202, 1
        %vm251 = vmand %vm247, %vm250
        %v252 = vstv %s246
        %v253 = vsel %vm251, %v252, 0.0
        %v254 = vstv %s234
        %v255 = vsel %vm249, %v254, %v253
        %256 = vst [vmem:[%s187] sm:$0xff] %v255
        %s257 = sand.u32 %s103, 1
        %s258 = scalar_lea.sflag [#allocation3], %s257
        %s259 = sand.u32 %s103, 1
        %s260 = smul.addr %s259, 8
        %s261 = scalar_lea.vmem [#allocation2], %s260
        // Predicated region
        $region33: #{tpu_custom_call.1} parent=31 // pred_check
          %p262 = pneg %p113
        $region34: #{tpu_custom_call.1} parent=31 // pred_check_branch
          %264 = sbr.rel (%p262) target = $region36
        $region35: #{tpu_custom_call.1} parent=31 // pred_region
          %s266 = ssub.s32 128, 128
          %267 = vsyncadd %s258, %s266
          %s268 = smul.addr %s17, 128
          %s269 = scalar_lea.hbm %s3, %s268
          %s271 = sshll.u32 %s261, 4
          %s272 = int_to_ptr.vmem [resolvable:$true] %s271
          %274 = dma.vmem_to_hbm [thread:$0]  %s272, 128, %s269, %s258
        $region36: #{tpu_custom_call.1} parent=31 // pred_fallthru
          _
      $region32: #{tpu_custom_call.1} parent=5 // pred_fallthru
        _
      %p275 = scmp.le.s32.totalorder 2, %s12
      // Predicated region
      $region37: #{tpu_custom_call.1} parent=5 // pred_check
        %p276 = pneg %p275
      $region38: #{tpu_custom_call.1} parent=5 // pred_check_branch
        %278 = sbr.rel (%p276) target = $region40
      $region39: #{tpu_custom_call.1} parent=5 // pred_region
        %s279 = ssub.s32 %s12, 2
        // Predicated region
        $region41: #{tpu_custom_call.1} parent=39 // pred_check
          %p280 = pneg %p119
        $region42: #{tpu_custom_call.1} parent=39 // pred_check_branch
          %282 = sbr.rel (%p280) target = $region44
        $region43: #{tpu_custom_call.1} parent=39 // pred_region
          %s283 = sand.u32 %s104, 1
          %s284 = scalar_lea.sflag [#allocation3], %s283
          %s285 = sand.u32 %s104, 1
          %s286 = smul.addr %s285, 8
          %s287 = scalar_lea.vmem [#allocation2], %s286
          %288 = dma.done %s284, 128
        $region44: #{tpu_custom_call.1} parent=39 // pred_fallthru
          _
      $region40: #{tpu_custom_call.1} parent=5 // pred_fallthru
        _
    $region6: #{tpu_custom_call.1} parent=1 // loop_footer
      %s16 = sadd.s32 1, %s12
    $region7: #{tpu_custom_call.1} parent=1 // loop_footer_branch
      %11 = sbr.rel target = $region3
    $region8: #{tpu_custom_call.1} parent=1 // loop_exit
      _
    %289 = vsyncpa [#allocation3], 1
    %s290 = scalar_lea.sflag [#allocation3], 1
    %291 = vsyncpa %s290, 1

</llo_original>
